<compile_context>
chip_gen: v5e
topology: v5e:2x2
jax: 0.10.0
libtpu: 0.0.40
codegen_flags: <defaults>
</compile_context>

<pallas_src>
import numpy as np
import jax
import jax.numpy as jnp
from jax import lax
from jax.experimental import pallas as pl
from jax.experimental.pallas import tpu as pltpu


# -----------------------------------------------------------------------------
# Fixed SRM weights (normalized per kernel by sum of |w|), baked in at trace time.
# -----------------------------------------------------------------------------
_SRM_RAW = np.array(
    [
        [[-1, 2, -2, 2, -1],
         [2, -6, 8, -6, 2],
         [-2, 8, -12, 8, -2],
         [2, -6, 8, -6, 2],
         [-1, 2, -2, 2, -1]],
        [[0, 0, 0, 0, 0],
         [0, -1, 2, -1, 0],
         [0, 2, -4, 2, 0],
         [0, -1, 2, -1, 0],
         [0, 0, 0, 0, 0]],
        [[0, 0, 1, 0, 0],
         [0, 2, -8, 2, 0],
         [1, -8, 20, -8, 1],
         [0, 2, -8, 2, 0],
         [0, 0, 1, 0, 0]],
    ],
    dtype=np.float32,
)
_SRM = _SRM_RAW / np.abs(_SRM_RAW).sum(axis=(1, 2), keepdims=True)  # (3, 5, 5)

# All three SRM kernels are symmetric under row/column reflection, so the conv
# is a linear combination of 9 symmetric shift-sums C[d][e] (offsets +-d, +-e).
_QUARTER = _SRM[:, 2:, 2:]  # (filter, d, e)


def _quarter_weight_groups():
    """Per filter: [(weight, [(d, e), ...]), ...] with equal weights grouped."""
    groups = []
    for k in range(3):
        g = {}
        for d in range(3):
            for e in range(3):
                w = float(_QUARTER[k, d, e])
                if w != 0.0:
                    g.setdefault(w, []).append((d, e))
        groups.append(sorted(g.items()))
    return groups


_QGROUPS = _quarter_weight_groups()


def _choose_layout(H, W):
    """Pick a lane-dense folded layout (R, L) with R * L == H * W and L % W == 0."""
    N = H * W
    if W % 128 == 0:
        return H, W                      # already lane aligned
    if N <= 4096:
        return 1, N                      # small image: fully flattened, pure lane rolls
    for f in range(2, H + 1):            # fold f image rows per buffer row
        if H % f == 0 and (f * W) % 128 == 0 and f * W <= 2048:
            return H // f, f * W
    return H, W                          # fallback: unfolded


# pltpu.roll lowers to the Mosaic rotate op; pin its rotate direction once with
# a tiny 128-lane probe so the halo masks land on the correct boundary side.
_ROLL_SIGN = None


def _roll_sign():
    global _ROLL_SIGN
    if _ROLL_SIGN is None:
        def probe(x_ref, o_ref):
            o_ref[...] = pltpu.roll(x_ref[...], 1, axis=1)

        xp = jnp.arange(128, dtype=jnp.float32).reshape(1, 128)
        yp = pl.pallas_call(
            probe, out_shape=jax.ShapeDtypeStruct((1, 128), jnp.float32))(xp)
        # np.roll semantics => y[0, 1] == x[0, 0] == 0; opposite => y[0, 1] == 2.
        _ROLL_SIGN = -1 if float(jax.device_get(yp)[0, 1]) == 0.0 else 1
    return _ROLL_SIGN


def _make_srm_kernel(H, W, R, L, out_dtype, roll_sign):
    F = L // W          # image rows folded per buffer row
    S = 3 * R           # sublane rows per block (3 input channels stacked)

    def rolled(v, k, axis, size):
        """result[..., i, ...] = v[..., (i + k) % size, ...] (circular)."""
        k = k % size
        if k == 0:
            return v
        return pltpu.roll(v, (roll_sign * k) % size, axis=axis)

    def kernel(x_ref, o_ref):
        x = x_ref[0].astype(jnp.float32)                        # (S, L)
        lane = lax.broadcasted_iota(jnp.int32, (S, L), 1)
        col = lane % W                                          # image column
        if R == 1:
            img_row = lane // W
        else:
            brow = lax.broadcasted_iota(jnp.int32, (S, L), 0)
            img_row = (brow % R) * F + lane // W

        # Validity masks for the 2-pixel zero halo (conv padding=2).
        col_ok = {s: (col < W - s) if s > 0 else (col >= -s)
                  for s in (-2, -1, 1, 2)}
        row_ok = {s: (img_row < H - s) if s > 0 else (img_row >= -s)
                  for s in (-2, -1, 1, 2)}

        def flat_shift(v, s):
            # result.flat[i] = v.flat[i + s] in each channel's row-major H*W
            # space; positions whose source is outside the image are garbage
            # here and zeroed by the caller's mask.
            q, rem = divmod(s, L)
            out = v
            if rem:
                out = rolled(out, rem, axis=1, size=L)
            if R > 1:
                if q % S:
                    out = rolled(out, q, axis=0, size=S)
                if rem:
                    nxt = rolled(out, 1, axis=0, size=S)
                    out = jnp.where(lane + rem < L, out, nxt)
            return out

        def shift_rows(v, sy):   # v[y + sy, x], zero outside the image
            return jnp.where(row_ok[sy], flat_shift(v, sy * W), 0.0)

        def shift_cols(v, sx):   # v[y, x + sx], zero outside the image
            return jnp.where(col_ok[sx], flat_shift(v, sx), 0.0)

        # Row-symmetric bases, shared by all filters and output channels.
        base = [
            x,
            shift_rows(x, -1) + shift_rows(x, 1),
            shift_rows(x, -2) + shift_rows(x, 2),
        ]
        # Column-symmetric combinations C[d][e] = sum over offsets (+-d, +-e).
        C = []
        for d in range(3):
            C.append([
                base[d],
                shift_cols(base[d], -1) + shift_cols(base[d], 1),
                shift_cols(base[d], -2) + shift_cols(base[d], 2),
            ])

        # Each filter = weight-grouped linear combination of the C[d][e];
        # rows [c*R, (c+1)*R) of the result are filter k applied to channel c.
        for k in range(3):
            acc = None
            for w, des in _QGROUPS[k]:
                ssum = None
                for (d, e) in des:
                    ssum = C[d][e] if ssum is None else ssum + C[d][e]
                term = w * ssum
                acc = term if acc is None else acc + term
            acc = acc.astype(out_dtype)
            for c in range(3):
                o = (3 * c + k) * R
                o_ref[0, o:o + R, :] = acc[c * R:(c + 1) * R, :]

    return kernel


def srm_filter(x):
    """Pallas TPU implementation of SRMFilter.forward: (B, 3, H, W) -> (B, 9, H, W)."""
    B, Cin, H, W = x.shape
    assert Cin == 3, "SRMFilter expects 3 input channels"
    assert jnp.issubdtype(x.dtype, jnp.floating), "SRMFilter expects a floating dtype"

    R, L = _choose_layout(H, W)
    assert R * L == H * W and L % W == 0

    # Free (contiguous) reshape into the lane-dense folded layout; no jnp.pad.
    xr = x.reshape(B, 3 * R, L)

    kernel = _make_srm_kernel(H, W, R, L, x.dtype, _roll_sign())

    # Whole-image blocks: raise the scoped-VMEM limit only if the working set
    # (double-buffered in/out + ~18 f32 temporaries) would exceed the default.
    vmem_need = 2 * (3 + 9) * R * L * x.dtype.itemsize + 18 * 3 * R * L * 4 + (1 << 20)
    cparams = dict(dimension_semantics=("parallel",))
    if vmem_need > (16 << 20):
        cparams["vmem_limit_bytes"] = min(int(vmem_need), 100 << 20)

    out = pl.pallas_call(
        kernel,
        out_shape=jax.ShapeDtypeStruct((B, 9 * R, L), x.dtype),
        grid_spec=pltpu.PrefetchScalarGridSpec(
            num_scalar_prefetch=0,
            grid=(B,),
            in_specs=[pl.BlockSpec((1, 3 * R, L), lambda b: (b, 0, 0))],
            out_specs=pl.BlockSpec((1, 9 * R, L), lambda b: (b, 0, 0)),
        ),
        compiler_params=pltpu.CompilerParams(**cparams),
    )(xr)
    return out.reshape(B, 9, H, W)


def srm_filter_ref(x):
    """Pure-JAX reference (XLA conv) for sanity checking."""
    w = np.zeros((9, 3, 5, 5), np.float32)
    for i in range(3):
        for k in range(3):
            w[3 * i + k, i] = _SRM[k]
    return lax.conv_general_dilated(
        x.astype(jnp.float32),
        jnp.asarray(w),
        window_strides=(1, 1),
        padding=((2, 2), (2, 2)),
        dimension_numbers=("NCHW", "OIHW", "NCHW"),
    ).astype(x.dtype)


if __name__ == "__main__":
    key = jax.random.PRNGKey(0)
    # RGB image batch: [B=2, C=3, H=16, W=16]
    x = jax.random.normal(key, (2, 3, 16, 16), dtype=jnp.float32)

    out = jax.block_until_ready(srm_filter(x))
    ref = jax.block_until_ready(srm_filter_ref(x))

    assert out.shape == (2, 9, 16, 16), out.shape
    assert jnp.allclose(out, ref, rtol=1e-5, atol=1e-5), (
        float(jnp.max(jnp.abs(out - ref))))
    print("KERNEL_OK")
</pallas_src>

<mosaic_0001>
module attributes {stable_mosaic.version = 11 : i64} {
  func.func @probe(%arg0: memref<1x128xf32, #tpu.memory_space<vmem>>, %arg1: memref<1x128xf32, #tpu.memory_space<vmem>>) attributes {dimension_semantics = [], scalar_prefetch = 0 : i64, scratch_operands = 0 : i64, tpu.core_type = #tpu.core_type<tc>} {
    %c0 = arith.constant 0 : index
    %c0_0 = arith.constant 0 : index
    %0 = vector.load %arg0[%c0, %c0_0] : memref<1x128xf32, #tpu.memory_space<vmem>>, vector<1x128xf32>
    %c1_i32 = arith.constant 1 : i32
    %1 = tpu.dynamic_rotate %0 by %c1_i32 dim 1 : vector<1x128xf32>, i32 -> vector<1x128xf32>
    %c0_1 = arith.constant 0 : index
    %c0_2 = arith.constant 0 : index
    %2 = vector.load %arg1[%c0_1, %c0_2] : memref<1x128xf32, #tpu.memory_space<vmem>>, vector<1x128xf32>
    tpu.vector_store %arg1[%c0_1, %c0_2], %1 {strides = array<i32>} : memref<1x128xf32, #tpu.memory_space<vmem>>, vector<1x128xf32>,
    return
  }
}

</mosaic_0001>

<llo_original>
// kernel: tpu_custom_call.1
$region0: #{tpu_custom_call.1}
  #allocation0 [shape = 'u32[]', space=smem, size = 0x4, offset = 0x4, fixed_abs, tag = 'smem constant byte address 0x4 - core index']
  #allocation1 [shape = 'u32[72,128]{1,0:T(1,128)}', space=vmem, size = 0x9000, scoped, tag = 'internal scratch']
  %s0 = inlined_call_operand.hbm [shape: f32[1,128], index: 0, kind: input, shape index: {}]
  %s1 = inlined_call_operand.hbm [shape: f32[1,128], index: 1, kind: output, shape index: {}]
  %s2 = sld [smem:[#allocation0]]
  $region18: #{tpu_custom_call.1} parent=0
    _
  %s4 = ssub.s32 1, %s2
  %s5 = scalar_select 0, %s4, %s2
  $region1: #{tpu_custom_call.1} parent=0
    #allocation2 [shape = 'u8[512]{0}', space=vmem, size = 0x400, scoped, tag = 'input window, operand 0, single buffered']
    #allocation3 [shape = 's32[1]{0}', space=sflag, size = 0x4, scoped, tag = 'scoped memory for tpu_custom_call.1']
    #allocation4 [shape = 's32[1]{0}', space=sflag, size = 0x4, scoped, tag = 'scoped memory for tpu_custom_call.1']
    #allocation5 [shape = 'u8[512]{0}', space=vmem, size = 0x400, scoped, tag = 'output window, operand 0, single buffered']
    %6 = vsyncpa [#allocation3], 0
    %7 = vsyncpa [#allocation4], 0
    // Predicated region
    $region2: #{tpu_custom_call.1} parent=1 // pred_check
      _
    $region3: #{tpu_custom_call.1} parent=1 // pred_check_branch
      %9 = sbr.rel (0) target = $region5
    $region4: #{tpu_custom_call.1} parent=1 // pred_region
      %11 = vsyncadd [#allocation3], 0
      %s13 = sshll.u32 %s0, 4
      %s14 = int_to_ptr.hbm [resolvable:$true] %s13
      %s15 = sshll.u32 [#allocation2], 4
      %s16 = int_to_ptr.vmem [resolvable:$true] %s15
      %18 = dma.hbm_to_vmem [thread:$0]  %s14, 16, %s16, [#allocation3]
    $region5: #{tpu_custom_call.1} parent=1 // pred_fallthru
      _
    // Predicated region
    $region6: #{tpu_custom_call.1} parent=1 // pred_check
      _
    $region7: #{tpu_custom_call.1} parent=1 // pred_check_branch
      %20 = sbr.rel (0) target = $region9
    $region8: #{tpu_custom_call.1} parent=1 // pred_region
      %22 = dma.done [#allocation3], 16
    $region9: #{tpu_custom_call.1} parent=1 // pred_fallthru
      _
    %v23 = vld [vmem:[#allocation2] sm:$0x1]
    %24 = vrot.lane.b32.xlu0 %v23, 1
    %v25 = vpop.permute.xlu0 %24
    %26 = vst [vmem:[#allocation5] sm:$0x1] %v25
    // Predicated region
    $region10: #{tpu_custom_call.1} parent=1 // pred_check
      _
    $region11: #{tpu_custom_call.1} parent=1 // pred_check_branch
      %28 = sbr.rel (0) target = $region13
    $region12: #{tpu_custom_call.1} parent=1 // pred_region
      %30 = vsyncadd [#allocation4], 0
      %s32 = sshll.u32 [#allocation5], 4
      %s33 = int_to_ptr.vmem [resolvable:$true] %s32
      %s34 = sshll.u32 %s1, 4
      %s35 = int_to_ptr.hbm [resolvable:$true] %s34
      %37 = dma.vmem_to_hbm [thread:$0]  %s33, 16, %s35, [#allocation4]
    $region13: #{tpu_custom_call.1} parent=1 // pred_fallthru
      _
    // Predicated region
    $region14: #{tpu_custom_call.1} parent=1 // pred_check
      _
    $region15: #{tpu_custom_call.1} parent=1 // pred_check_branch
      %39 = sbr.rel (0) target = $region17
    $region16: #{tpu_custom_call.1} parent=1 // pred_region
      %41 = dma.done [#allocation4], 16
    $region17: #{tpu_custom_call.1} parent=1 // pred_fallthru
      _
    %42 = vsyncpa [#allocation3], 1
    %43 = vsyncpa [#allocation4], 1

</llo_original>
